<compile_context>
chip_gen: v6e
topology: v6e:2x2x1
jax: 0.10.0
libtpu: 0.0.40
codegen_flags: <defaults>
</compile_context>

<pallas_src>
import functools

import jax
import jax.numpy as jnp
from jax.experimental import pallas as pl
from jax.experimental.pallas import tpu as pltpu


# --------------------------------------------------------------------------- #
# Kernel bodies
# --------------------------------------------------------------------------- #
def _pow_elementwise(xc, p_ref, static_p):
    """xc^p: static small-integer p -> VPU multiplies; else exp(p*log(x)) on the EUP."""
    if static_p is not None:
        powed = xc
        for _ in range(static_p - 1):
            powed = powed * xc
        return powed
    return jnp.exp(p_ref[0] * jnp.log(xc))


def _inv_p(p_ref, static_p):
    if static_p is not None:
        return 1.0 / float(static_p)
    return 1.0 / p_ref[0]


def gem_cf_kernel(p_ref, x_ref, out_ref, acc_ref, *,
                  eps, inv_s, s_valid, block_s, lanes, static_p):
    """Channels-first path.

    p_ref:   (1,) f32 in SMEM (GeM's learnable p).
    x_ref:   (bb, bc, bs) VMEM tile; flattened spatial dim on the lane axis.
    out_ref: (bb, bc) VMEM output block, resident across the spatial grid axis.
    acc_ref: (bb, bc, lanes) f32 scratch accumulator (lane-slab partial sums).
    """
    s_idx = pl.program_id(2)

    @pl.when(s_idx == 0)
    def _init():
        acc_ref[...] = jnp.zeros_like(acc_ref)

    x = x_ref[...].astype(jnp.float32)
    xc = jnp.maximum(x, eps)                         # clamp(min=eps) -> strictly > 0
    powed = _pow_elementwise(xc, p_ref, static_p)    # x^p

    if s_valid is not None:
        # Ragged spatial tail (S not a multiple of block_s): zero out-of-range lanes.
        lane = jax.lax.broadcasted_iota(jnp.int32, powed.shape, 2)
        powed = jnp.where(s_idx * block_s + lane < s_valid, powed, 0.0)

    # Fold the bs-wide tile into one `lanes`-wide slab using VPU adds only; the XLU
    # lane reduction / relayout is deferred to the finalize step below.
    n_slabs = block_s // lanes
    partial = powed[:, :, :lanes]
    for i in range(1, n_slabs):
        partial = partial + powed[:, :, i * lanes:(i + 1) * lanes]
    acc_ref[...] += partial

    @pl.when(s_idx == pl.num_programs(2) - 1)
    def _finalize():
        mean = jnp.sum(acc_ref[...], axis=-1) * inv_s    # single lane reduce
        out_ref[...] = jnp.exp(
            jnp.log(mean) * _inv_p(p_ref, static_p)).astype(out_ref.dtype)


def gem_cl_kernel(p_ref, x_ref, out_ref, *, eps, inv_s, static_p):
    """Channels-last path for tiny spatial maps (S < 128, C % 128 == 0).

    x_ref:   (bb, S, bc) VMEM tile, channels on the lane axis (full vreg utilization).
    out_ref: (bb, bc) lane-dense output block.
    """
    x = x_ref[...].astype(jnp.float32)
    xc = jnp.maximum(x, eps)
    powed = _pow_elementwise(xc, p_ref, static_p)
    mean = jnp.sum(powed, axis=1) * inv_s               # sublane (S) reduce
    out_ref[...] = jnp.exp(
        jnp.log(mean) * _inv_p(p_ref, static_p)).astype(out_ref.dtype)


# --------------------------------------------------------------------------- #
# Block selection
# --------------------------------------------------------------------------- #
def _c_tile_candidates(C):
    """Channel-tile sizes: full C, plus 128-multiples that divide C (descending)."""
    cands = [C]
    if C % 128 == 0:
        for m in (4096, 2048, 1024, 512, 256, 128):
            if m < C and C % m == 0:
                cands.append(m)
    return cands


def _choose_blocks_cf(B, C, S, itemsize, budget_bytes, target_lanes=512):
    bb = 8 if (B > 8 and B % 8 == 0) else B
    s_cap = S if S <= 128 else ((S + 127) // 128) * 128   # lane-padded spatial extent
    cands = _c_tile_candidates(C)

    def bs_for(bc):
        if S <= 128:
            return S
        cap = budget_bytes // max(1, bb * bc * itemsize)
        return max(min(s_cap, (cap // 128) * 128), 128)

    bc, bs = cands[0], bs_for(cands[0])
    for c in cands:                      # largest bc whose block_s reaches the target
        s = bs_for(c)
        if s >= min(target_lanes, s_cap):
            bc, bs = c, s
            break
        if s > bs:
            bc, bs = c, s

    # v7x has two TensorCores: prefer >= 2 parallel (b, c) grid steps when C allows.
    if (B // bb) * (C // bc) < 2:
        for c in cands:
            if c < bc:
                bc, bs = c, bs_for(c)
                break
    return bb, bc, bs


def _choose_blocks_cl(B, C, S, itemsize, budget_bytes):
    bb = 8 if (B > 8 and B % 8 == 0) else B
    cands = _c_tile_candidates(C)
    bc = cands[0]
    for c in cands:
        bc = c
        if bb * S * c * itemsize <= budget_bytes:
            break
    if (B // bb) * (C // bc) < 2:        # keep both v7x TensorCores busy if possible
        for c in cands:
            if c < bc:
                bc = c
                break
    return bb, bc


def _vmem_limit(need_bytes):
    return int(min(max(2 * need_bytes, 32 << 20), 100 << 20))


# --------------------------------------------------------------------------- #
# pallas_call wrappers
# --------------------------------------------------------------------------- #
def _gem_channels_first(x2, p_arr, eps, static_p, bb, bc, bs):
    B, C, S = x2.shape
    itemsize = x2.dtype.itemsize
    nb, nc, ns = B // bb, C // bc, pl.cdiv(S, bs)
    lanes = bs if bs < 128 else 128
    ragged = (S % bs) != 0

    kernel = functools.partial(
        gem_cf_kernel, eps=float(eps), inv_s=1.0 / float(S),
        s_valid=(S if ragged else None), block_s=bs, lanes=lanes, static_p=static_p)

    need = (2 * bb * bc * bs * itemsize     # double-buffered x tile
            + bb * bc * lanes * 4           # f32 scratch accumulator
            + 2 * bb * bc * 4               # output block
            + (2 << 20))                    # headroom
    tr = (0 if static_p is not None else 2 * B * C * S) + 2 * B * C
    cost = pl.CostEstimate(flops=4 * B * C * S, transcendentals=int(tr),
                           bytes_accessed=int(B * C * S * itemsize + B * C * 4))

    return pl.pallas_call(
        kernel,
        out_shape=jax.ShapeDtypeStruct((B, C), jnp.float32),
        grid_spec=pltpu.PrefetchScalarGridSpec(
            num_scalar_prefetch=0,
            grid=(nb, nc, ns),
            in_specs=[
                pl.BlockSpec(memory_space=pltpu.MemorySpace.SMEM),          # p
                pl.BlockSpec((bb, bc, bs), lambda b, c, s: (b, c, s)),      # x tile
            ],
            out_specs=pl.BlockSpec((bb, bc), lambda b, c, s: (b, c)),       # resident
            scratch_shapes=[pltpu.VMEM((bb, bc, lanes), jnp.float32)],
        ),
        compiler_params=pltpu.CompilerParams(
            dimension_semantics=("parallel", "parallel", "arbitrary"),
            vmem_limit_bytes=_vmem_limit(need)),
        cost_estimate=cost,
    )(p_arr, x2)


def _gem_channels_last(x_cl, p_arr, eps, static_p, bb, bc):
    B, S, C = x_cl.shape
    itemsize = x_cl.dtype.itemsize
    nb, nc = B // bb, C // bc

    kernel = functools.partial(gem_cl_kernel, eps=float(eps),
                               inv_s=1.0 / float(S), static_p=static_p)

    need = 2 * bb * S * bc * itemsize + 2 * bb * bc * 4 + (2 << 20)
    tr = (0 if static_p is not None else 2 * B * C * S) + 2 * B * C
    cost = pl.CostEstimate(flops=4 * B * C * S, transcendentals=int(tr),
                           bytes_accessed=int(B * C * S * itemsize + B * C * 4))

    return pl.pallas_call(
        kernel,
        out_shape=jax.ShapeDtypeStruct((B, C), jnp.float32),
        grid_spec=pltpu.PrefetchScalarGridSpec(
            num_scalar_prefetch=0,
            grid=(nb, nc),
            in_specs=[
                pl.BlockSpec(memory_space=pltpu.MemorySpace.SMEM),          # p
                pl.BlockSpec((bb, S, bc), lambda b, c: (b, 0, c)),          # x tile
            ],
            out_specs=pl.BlockSpec((bb, bc), lambda b, c: (b, c)),
        ),
        compiler_params=pltpu.CompilerParams(
            dimension_semantics=("parallel", "parallel"),
            vmem_limit_bytes=_vmem_limit(need)),
        cost_estimate=cost,
    )(p_arr, x_cl)


# --------------------------------------------------------------------------- #
# Public entry point (matches GeM.forward semantics)
# --------------------------------------------------------------------------- #
def gem(x, p=3.0, eps=1e-6, *, block_b=None, block_c=None, block_s=None,
        budget_bytes=4 << 20):
    """x: (B, C, H, W); p: Python number or (1,) array.  Returns (B, C, 1, 1)."""
    B, C, H, W = x.shape
    S = H * W

    static_p = None
    if isinstance(p, (int, float)) and float(p) == int(p) and 1 <= int(p) <= 8:
        static_p = int(p)
    p_arr = jnp.asarray(p, jnp.float32).reshape(1)
    itemsize = x.dtype.itemsize

    use_cl = (S < 128) and (C % 128 == 0) and (C >= 128) and (block_s is None)
    if use_cl:
        # Tiny spatial map (e.g. 7x7): channels-last tiling for full lane utilization.
        # NOTE: producer-side NHWC would make this transpose free.
        x_cl = jnp.transpose(x.reshape(B, C, S), (0, 2, 1))
        bb, bc = _choose_blocks_cl(B, C, S, itemsize, budget_bytes)
        if block_b is not None:
            bb = block_b
        if block_c is not None:
            bc = block_c
        out = _gem_channels_last(x_cl, p_arr, eps, static_p, bb, bc)
    else:
        x2 = x.reshape(B, C, S)
        bb, bc, bs = _choose_blocks_cf(B, C, S, itemsize, budget_bytes)
        if block_b is not None:
            bb = block_b
        if block_c is not None:
            bc = block_c
        if block_s is not None:
            bs = block_s
        out = _gem_channels_first(x2, p_arr, eps, static_p, bb, bc, bs)

    return out.reshape(B, C, 1, 1).astype(x.dtype)


# ------------------------------ pure-JAX reference --------------------------- #
def gem_reference(x, p, eps=1e-6):
    p = jnp.asarray(p, jnp.float32).reshape(1)
    xc = jnp.maximum(x.astype(jnp.float32), eps)
    m = jnp.mean(xc ** p, axis=(-2, -1), keepdims=True)
    return (m ** (1.0 / p)).astype(x.dtype)


if __name__ == "__main__":
    eps = 1e-6
    key = jax.random.PRNGKey(0)
    k1, k3, k4 = jax.random.split(key, 3)
    p_arr = jnp.ones((1,), jnp.float32) * 3.0      # GeM learnable p (init 3)

    # 1) Channels-first path, single spatial tile, general (learnable-p) pow path.
    x1 = jax.random.normal(k1, (2, 4, 16, 16), jnp.float32)
    out1 = gem(x1, p_arr, eps=eps)
    jax.block_until_ready(out1)
    ref1 = gem_reference(x1, p_arr, eps=eps)
    assert out1.shape == (2, 4, 1, 1), out1.shape
    assert jnp.allclose(out1, ref1, atol=1e-5, rtol=1e-5), \
        float(jnp.max(jnp.abs(out1 - ref1)))

    # 2) Multi-tile spatial reduction (init / accumulate / finalize path).
    out2 = gem(x1, p_arr, eps=eps, block_s=128)
    jax.block_until_ready(out2)
    assert jnp.allclose(out2, ref1, atol=1e-5, rtol=1e-5)

    # 3) Ragged spatial extent (S = 255, not a multiple of 128): cdiv grid + lane mask.
    x3 = jax.random.normal(k3, (2, 4, 15, 17), jnp.float32)
    out3 = gem(x3, p_arr, eps=eps, block_s=128)
    jax.block_until_ready(out3)
    ref3 = gem_reference(x3, p_arr, eps=eps)
    assert jnp.allclose(out3, ref3, atol=1e-5, rtol=1e-5), \
        float(jnp.max(jnp.abs(out3 - ref3)))

    # 4) Tiny spatial map / wide channels: channels-last path, static-p fast path.
    x4 = jax.random.normal(k4, (2, 256, 7, 7), jnp.float32)
    out4 = gem(x4, 3, eps=eps)                    # static integer p -> VPU multiplies
    jax.block_until_ready(out4)
    ref4 = gem_reference(x4, 3.0, eps=eps)
    assert out4.shape == (2, 256, 1, 1)
    assert jnp.allclose(out4, ref4, atol=1e-5, rtol=1e-5), \
        float(jnp.max(jnp.abs(out4 - ref4)))

    # 4b) Same shape with a learnable (array) p -> general exp/log path on CL layout.
    out4b = gem(x4, p_arr, eps=eps)
    jax.block_until_ready(out4b)
    assert jnp.allclose(out4b, ref4, atol=1e-5, rtol=1e-5)

    print("KERNEL_OK")
</pallas_src>

<mosaic_0001>
module attributes {stable_mosaic.version = 11 : i64} {
  func.func @gem_cf_kernel(%arg0: i32, %arg1: i32, %arg2: i32, %arg3: memref<1xf32, #tpu.memory_space<smem>>, %arg4: memref<2x4x256xf32, #tpu.memory_space<vmem>>, %arg5: memref<2x4xf32, #tpu.memory_space<vmem>>, %arg6: memref<2x4x128xf32, #tpu.memory_space<vmem>>) attributes {dimension_semantics = [#tpu.dimension_semantics<parallel>, #tpu.dimension_semantics<parallel>, #tpu.dimension_semantics<arbitrary>], iteration_bounds = array<i64: 1, 1, 1>, scalar_prefetch = 0 : i64, scratch_operands = 1 : i64, tpu.core_type = #tpu.core_type<tc>, window_params = [{transform_indices = @transform_0, window_bounds = array<i64: 1>}, {transform_indices = @transform_1, window_bounds = array<i64: 2, 4, 256>}, {transform_indices = @transform_2, window_bounds = array<i64: 2, 4>}]} {
    %c0_i32 = arith.constant 0 : i32
    %0 = arith.cmpi eq, %arg2, %c0_i32 : i32
    %1 = arith.extui %0 : i1 to i32
    %c0_i32_0 = arith.constant 0 : i32
    %2 = arith.cmpi ne, %1, %c0_i32_0 : i32
    scf.if %2 {
      %cst_12 = arith.constant 0.000000e+00 : f32
      %20 = vector.broadcast %cst_12 : f32 to vector<2x4x128xf32>
      %c0_13 = arith.constant 0 : index
      %c0_14 = arith.constant 0 : index
      %c0_15 = arith.constant 0 : index
      %21 = vector.load %arg6[%c0_13, %c0_14, %c0_15] : memref<2x4x128xf32, #tpu.memory_space<vmem>>, vector<2x4x128xf32>
      tpu.vector_store %arg6[%c0_13, %c0_14, %c0_15], %20 {strides = array<i32>} : memref<2x4x128xf32, #tpu.memory_space<vmem>>, vector<2x4x128xf32>,
    } else {
    }
    %c0 = arith.constant 0 : index
    %c0_1 = arith.constant 0 : index
    %c0_2 = arith.constant 0 : index
    %3 = vector.load %arg4[%c0, %c0_1, %c0_2] : memref<2x4x256xf32, #tpu.memory_space<vmem>>, vector<2x4x256xf32>
    %cst = arith.constant 9.99999997E-7 : f32
    %4 = vector.broadcast %cst : f32 to vector<2x4x256xf32>
    %5 = arith.maximumf %3, %4 : vector<2x4x256xf32>
    %c0_3 = arith.constant 0 : index
    %6 = memref.load %arg3[%c0_3] : memref<1xf32, #tpu.memory_space<smem>>
    %7 = math.log %5 : vector<2x4x256xf32>
    %8 = vector.broadcast %6 : f32 to vector<2x4x256xf32>
    %9 = arith.mulf %8, %7 : vector<2x4x256xf32>
    %10 = math.exp %9 : vector<2x4x256xf32>
    %11 = vector.extract_strided_slice %10 {offsets = [0, 0, 0], sizes = [2, 4, 128], strides = [1, 1, 1]} : vector<2x4x256xf32> to vector<2x4x128xf32>
    %12 = vector.extract_strided_slice %10 {offsets = [0, 0, 128], sizes = [2, 4, 128], strides = [1, 1, 1]} : vector<2x4x256xf32> to vector<2x4x128xf32>
    %13 = arith.addf %11, %12 : vector<2x4x128xf32>
    %c0_4 = arith.constant 0 : index
    %c0_5 = arith.constant 0 : index
    %c0_6 = arith.constant 0 : index
    %14 = vector.load %arg6[%c0_4, %c0_5, %c0_6] : memref<2x4x128xf32, #tpu.memory_space<vmem>>, vector<2x4x128xf32>
    %15 = arith.addf %14, %13 : vector<2x4x128xf32>
    %c0_7 = arith.constant 0 : index
    %c0_8 = arith.constant 0 : index
    %c0_9 = arith.constant 0 : index
    %16 = vector.load %arg6[%c0_7, %c0_8, %c0_9] : memref<2x4x128xf32, #tpu.memory_space<vmem>>, vector<2x4x128xf32>
    tpu.vector_store %arg6[%c0_7, %c0_8, %c0_9], %15 {strides = array<i32>} : memref<2x4x128xf32, #tpu.memory_space<vmem>>, vector<2x4x128xf32>,
    %c0_i32_10 = arith.constant 0 : i32
    %17 = arith.cmpi eq, %arg2, %c0_i32_10 : i32
    %18 = arith.extui %17 : i1 to i32
    %c0_i32_11 = arith.constant 0 : i32
    %19 = arith.cmpi ne, %18, %c0_i32_11 : i32
    scf.if %19 {
      %c0_12 = arith.constant 0 : index
      %c0_13 = arith.constant 0 : index
      %c0_14 = arith.constant 0 : index
      %20 = vector.load %arg6[%c0_12, %c0_13, %c0_14] : memref<2x4x128xf32, #tpu.memory_space<vmem>>, vector<2x4x128xf32>
      %cst_15 = arith.constant dense<0.000000e+00> : vector<2x4xf32>
      %21 = vector.multi_reduction <add>, %20, %cst_15 [2] : vector<2x4x128xf32> to vector<2x4xf32>
      %cst_16 = arith.constant 3.906250e-03 : f32
      %22 = vector.broadcast %cst_16 : f32 to vector<2x4xf32>
      %23 = arith.mulf %21, %22 : vector<2x4xf32>
      %24 = math.log %23 : vector<2x4xf32>
      %c0_17 = arith.constant 0 : index
      %25 = memref.load %arg3[%c0_17] : memref<1xf32, #tpu.memory_space<smem>>
      %cst_18 = arith.constant 1.000000e+00 : f32
      %26 = arith.divf %cst_18, %25 : f32
      %27 = vector.broadcast %26 : f32 to vector<2x4xf32>
      %28 = arith.mulf %24, %27 : vector<2x4xf32>
      %29 = math.exp %28 : vector<2x4xf32>
      %c0_19 = arith.constant 0 : index
      %c0_20 = arith.constant 0 : index
      %30 = vector.load %arg5[%c0_19, %c0_20] : memref<2x4xf32, #tpu.memory_space<vmem>>, vector<2x4xf32>
      tpu.vector_store %arg5[%c0_19, %c0_20], %29 {strides = array<i32>} : memref<2x4xf32, #tpu.memory_space<vmem>>, vector<2x4xf32>,
    } else {
    }
    return
  }
  func.func @transform_0(%arg0: i32, %arg1: i32, %arg2: i32) -> i32 {
    %c0_i32 = arith.constant 0 : i32
    %c0_i32_0 = arith.constant 0 : i32
    return %c0_i32 : i32
  }
  func.func @transform_1(%arg0: i32, %arg1: i32, %arg2: i32) -> (i32, i32, i32) {
    %c0_i32 = arith.constant 0 : i32
    return %arg0, %arg1, %arg2 : i32, i32, i32
  }
  func.func @transform_2(%arg0: i32, %arg1: i32, %arg2: i32) -> (i32, i32) {
    %c0_i32 = arith.constant 0 : i32
    return %arg0, %arg1 : i32, i32
  }
}

</mosaic_0001>

<llo_original>
// kernel: tpu_custom_call.1
$region0: #{tpu_custom_call.1}
  #allocation0 [shape = 'u32[]', space=smem, size = 0x4, offset = 0x4, fixed_abs, tag = 'smem constant byte address 0x4 - core index']
  #allocation1 [shape = 'u32[144,128]{1,0:T(1,128)}', space=vmem, size = 0x12000, scoped, tag = 'internal scratch']
  #allocation2 [shape = 'f32[2,4,128]{2,1,0:T(4,128)}', space=vmem, size = 0x1000, scoped, tag = 'scratch operand']
  #allocation3 [shape = 'f32[1]{0:T(128)S(6)}', space=smem, size = 0x200, scoped, tag = 'scoped memory for tpu_custom_call.1']
  %s0 = inlined_call_operand.<no memory space> [shape: f32[1], index: 0, kind: input, shape index: {}]
  %s1 = inlined_call_operand.hbm [shape: f32[2,4,256], index: 1, kind: input, shape index: {}]
  %s2 = inlined_call_operand.hbm [shape: f32[2,4], index: 2, kind: output, shape index: {}]
  %s3 = sld [smem:[#allocation0]]
  $region30: #{tpu_custom_call.1} parent=0
    _
  %s5 = ssub.s32 1, %s3
  %s6 = scalar_select 0, %s5, %s3
  %7 = sst [smem:[#allocation3]] %s0
  $region1: #{tpu_custom_call.1} parent=0
    #allocation4 [shape = 'u8[8192]{0}', space=vmem, size = 0x2000, scoped, tag = 'input window, operand 1, single buffered']
    #allocation5 [shape = 's32[1]{0}', space=sflag, size = 0x4, scoped, tag = 'scoped memory for tpu_custom_call.1']
    #allocation6 [shape = 's32[1]{0}', space=sflag, size = 0x4, scoped, tag = 'scoped memory for tpu_custom_call.1']
    #allocation7 [shape = 'u8[1024]{0}', space=vmem, size = 0x400, scoped, tag = 'output window, operand 0, single buffered']
    %8 = vsyncpa [#allocation5], 0
    %9 = vsyncpa [#allocation6], 0
    // Predicated region
    $region2: #{tpu_custom_call.1} parent=1 // pred_check
      _
    $region3: #{tpu_custom_call.1} parent=1 // pred_check_branch
      %11 = sbr.rel (0) target = $region5
    $region4: #{tpu_custom_call.1} parent=1 // pred_region
      _
    $region5: #{tpu_custom_call.1} parent=1 // pred_fallthru
      _
    // Predicated region
    $region6: #{tpu_custom_call.1} parent=1 // pred_check
      _
    $region7: #{tpu_custom_call.1} parent=1 // pred_check_branch
      %13 = sbr.rel (0) target = $region9
    $region8: #{tpu_custom_call.1} parent=1 // pred_region
      %s15 = ssub.s32 256, 256
      %16 = vsyncadd [#allocation5], %s15
      %s17 = sshll.u32 [#allocation4], 4
      %s18 = int_to_ptr.vmem [resolvable:$true] %s17
      %23 = dma.hbm_to_vmem [thread:$0]  %s1, 256, %s18, [#allocation5], 128, 128, 8
    $region9: #{tpu_custom_call.1} parent=1 // pred_fallthru
      _
    // Predicated region
    $region10: #{tpu_custom_call.1} parent=1 // pred_check
      _
    $region11: #{tpu_custom_call.1} parent=1 // pred_check_branch
      %25 = sbr.rel (0) target = $region13
    $region12: #{tpu_custom_call.1} parent=1 // pred_region
      %26 = dma.done [#allocation5], 256
    $region13: #{tpu_custom_call.1} parent=1 // pred_fallthru
      _
    %p27 = scmp.eq.s32.totalorder 0, 0
    // Predicated region
    $region14: #{tpu_custom_call.1} parent=1 // pred_check
      %p28 = pneg %p27
    $region15: #{tpu_custom_call.1} parent=1 // pred_check_branch
      %30 = sbr.rel (%p28) target = $region17
    $region16: #{tpu_custom_call.1} parent=1 // pred_region
      %31 = vst [vmem:[#allocation2] sm:$0xf] 0.0
      %32 = vst [vmem:[#allocation2 + $0x4] sm:$0xf] 0.0
    $region17: #{tpu_custom_call.1} parent=1 // pred_fallthru
      _
    %v33 = vld [vmem:[#allocation4] sm:$0xff]
    %v34 = vld [vmem:[#allocation4 + $0x8] sm:$0xff]
    %v35 = vmax.f32 %v33, 1e-06
    %v36 = vmax.f32 %v34, 1e-06
    %s37 = sld [smem:[#allocation3]]
    %v38 = vlog2.pop %v35
    %v39 = vmul.f32 %v38, 0.6931472
    %v40 = vlog2.pop %v36
    %v41 = vmul.f32 %v40, 0.6931472
    %v42 = vstv %s37
    %v43 = vmul.f32 %v42, %v39
    %v44 = vmul.f32 %v42, %v41
    %v45 = vmul.f32 %v43, 1.442695
    %v46 = vpow.pop %v45
    %v47 = vmul.f32 %v44, 1.442695
    %v48 = vpow.pop %v47
    %v51 = vrot.slane %v46, 4
    %v52 = vrot.slane %v48, 4
    %v55 = vadd.f32 %v46, %v51
    %v56 = vadd.f32 %v48, %v52
    %v57 = vld [vmem:[#allocation2] sm:$0xf]
    %v58 = vld [vmem:[#allocation2 + $0x4] sm:$0xf]
    %v59 = vadd.f32 %v57, %v55
    %v60 = vadd.f32 %v58, %v56
    %61 = vst [vmem:[#allocation2] sm:$0xf] %v59
    %62 = vst [vmem:[#allocation2 + $0x4] sm:$0xf] %v60
    // Predicated region
    $region18: #{tpu_custom_call.1} parent=1 // pred_check
      %p63 = pneg %p27
    $region19: #{tpu_custom_call.1} parent=1 // pred_check_branch
      %65 = sbr.rel (%p63) target = $region21
    $region20: #{tpu_custom_call.1} parent=1 // pred_region
      %v66 = vld [vmem:[#allocation2] sm:$0xf]
      %v67 = vld [vmem:[#allocation2 + $0x4] sm:$0xf]
      %vm68 = vcmask 1043456
      %v69 = vsel %vm68, %v66, 0.0
      %70 = vadd.xlane.f32.xlu0 %v69
      %v71 = vpop.xlane.xlu0 %70
      %v72 = vsel %vm68, %v67, 0.0
      %73 = vadd.xlane.f32.xlu0 %v72
      %v74 = vpop.xlane.xlu0 %73
      %v75 = vmul.f32 %v71, 0.00390625
      %v76 = vmul.f32 %v74, 0.00390625
      %v77 = vlog2.pop %v75
      %v78 = vmul.f32 %v77, 0.6931472
      %v79 = vlog2.pop %v76
      %v80 = vmul.f32 %v79, 0.6931472
      %s81 = sld [smem:[#allocation3]]
      %v82 = vstv %s81
      %v83 = vrcp.pop %v82
      %s84 = vtos %v83
      %v85 = vstv %s84
      %v86 = vmul.f32 %v78, %v85
      %v87 = vmul.f32 %v80, %v85
      %v88 = vmul.f32 %v86, 1.442695
      %v89 = vpow.pop %v88
      %v90 = vmul.f32 %v87, 1.442695
      %v91 = vpow.pop %v90
      %v94 = vlaneseq
      %v95 = vand.u32 %v94, 127
      %v96 = vlaneseq
      %v97 = vshrl.u32 %v96, 7
      %v98 = vsub.s32 %v95, %v97
      %v99 = vrot.slane %v89, %v98
      %v100 = vlaneseq
      %v101 = vshrl.u32 %v100, 7
      %v102 = vsub.s32 %v95, %v101
      %v103 = vrot.slane %v91, %v102
      %vm104 = vcmask 1041409
      %v105 = vsel %vm104, %v103, %v99
      %vm107 = vcmask 25600
      %108 = vst.msk [vmem:[#allocation7] sm:$0x3] %vm107, %v105
    $region21: #{tpu_custom_call.1} parent=1 // pred_fallthru
      _
    // Predicated region
    $region22: #{tpu_custom_call.1} parent=1 // pred_check
      _
    $region23: #{tpu_custom_call.1} parent=1 // pred_check_branch
      %110 = sbr.rel (0) target = $region25
    $region24: #{tpu_custom_call.1} parent=1 // pred_region
      %s112 = ssub.s32 32, 32
      %113 = vsyncadd [#allocation6], %s112
      %s115 = sshll.u32 [#allocation7], 4
      %s116 = int_to_ptr.vmem [resolvable:$true] %s115
      %118 = dma.vmem_to_hbm [thread:$0]  %s116, 32, %s2, [#allocation6]
    $region25: #{tpu_custom_call.1} parent=1 // pred_fallthru
      _
    // Predicated region
    $region26: #{tpu_custom_call.1} parent=1 // pred_check
      _
    $region27: #{tpu_custom_call.1} parent=1 // pred_check_branch
      %120 = sbr.rel (0) target = $region29
    $region28: #{tpu_custom_call.1} parent=1 // pred_region
      %121 = dma.done [#allocation6], 32
    $region29: #{tpu_custom_call.1} parent=1 // pred_fallthru
      _
    %122 = vsyncpa [#allocation5], 1
    %123 = vsyncpa [#allocation6], 1

</llo_original>
